<compile_context>
chip_gen: v7x
topology: tpu7x:2x2x1
jax: 0.10.0
libtpu: 0.0.40
codegen_flags: <defaults>
</compile_context>

<pallas_src>
import jax
import jax.numpy as jnp
from jax.experimental import pallas as pl
from jax.experimental.pallas import tpu as pltpu

GAMMA = 2.0   # module default; treated as the integer power 2 below
ALPHA = 1.0


def _focal_loss_kernel(logits_ref, targets_ref, out_ref):
    # logits_ref: (TB, C) float (any dtype), targets_ref: (TB, 1) int32,
    # out_ref:   (TB, 1) float32 per-row focal loss.
    logits = logits_ref[...].astype(jnp.float32)           # per-tile upcast (bf16-safe)
    tgt = targets_ref[...]                                  # (TB, 1) int32
    tb, c = logits.shape

    # Numerically-stable log-softmax pieces.
    row_max = jnp.max(logits, axis=-1, keepdims=True)       # (TB, 1)
    shifted = logits - row_max                               # (TB, C)
    sum_exp = jnp.sum(jnp.exp(shifted), axis=-1, keepdims=True)  # (TB, 1)

    # Target gather fused on the shifted values (row_max cancels in ce):
    # ce = logsumexp(logits) - logits[tgt] = log(sum_exp) - shifted[tgt]
    col = jax.lax.broadcasted_iota(jnp.int32, (tb, c), dimension=1)
    tgt_shifted = jnp.sum(jnp.where(col == tgt, shifted, 0.0),
                          axis=-1, keepdims=True)            # (TB, 1)

    ce = jnp.log(sum_exp) - tgt_shifted                      # (TB, 1), >= 0
    pt = jnp.exp(-ce)
    omp = jnp.maximum(1.0 - pt, 0.0)                         # clamp fp rounding at 0
    # gamma == 2 -> explicit multiply chain instead of pow() (which would lower to
    # exp(gamma * log(x)) on the single EUP slot and NaN for tiny negative x).
    modulator = omp * omp
    out_ref[...] = ALPHA * modulator * ce


def _choose_block_rows(B: int, C: int, itemsize: int, block_rows=None,
                       target_bytes: int = 8 << 20) -> int:
    """Pick the batch tile: multiple of 8 sublanes, ~target_bytes of logits/buffer."""
    if block_rows is None:
        rows = max(1, target_bytes // max(1, C * itemsize))
    else:
        rows = int(block_rows)
    rows = min(rows, B)
    if rows < B:
        rows = max(8, (rows // 8) * 8)     # sublane-aligned when actually tiling
        if rows >= B:
            rows = B                        # block == full dim is always legal
    return int(rows)


def focal_loss(predictions: jax.Array, targets: jax.Array, block_rows=None) -> jax.Array:
    """predictions: (B, C) float logits, targets: (B,) int — returns scalar f32."""
    B, C = predictions.shape
    targets2d = targets.astype(jnp.int32).reshape(B, 1)

    itemsize = jnp.dtype(predictions.dtype).itemsize
    tb = _choose_block_rows(B, C, itemsize, block_rows)
    grid = (pl.cdiv(B, tb),)

    per_row = pl.pallas_call(
        _focal_loss_kernel,
        out_shape=jax.ShapeDtypeStruct((B, 1), jnp.float32),
        grid=grid,
        in_specs=[
            pl.BlockSpec((tb, C), lambda i: (i, 0)),   # logits tile, full C per block
            pl.BlockSpec((tb, 1), lambda i: (i, 0)),   # targets tile (tiny)
        ],
        out_specs=pl.BlockSpec((tb, 1), lambda i: (i, 0)),
        compiler_params=pltpu.CompilerParams(
            dimension_semantics=("parallel",),          # disjoint outputs -> 2-TC friendly
            vmem_limit_bytes=48 * 1024 * 1024,          # headroom, still safe on v7x (64 MiB)
        ),
    )(predictions, targets2d)

    # Final mean in the wrapper over the true B (padded edge rows are never written).
    return jnp.sum(per_row) / B


def _reference_focal_loss(preds: jax.Array, tgts: jax.Array) -> jax.Array:
    p32 = preds.astype(jnp.float32)
    lse = jax.nn.logsumexp(p32, axis=-1)
    ce = lse - jnp.take_along_axis(p32, tgts[:, None].astype(jnp.int32), axis=-1)[:, 0]
    pt = jnp.exp(-ce)
    return jnp.mean(ALPHA * (1.0 - pt) ** GAMMA * ce)


if __name__ == "__main__":
    key = jax.random.PRNGKey(0)
    k_pred, k_tgt = jax.random.split(key)

    # Small test consistent with the module: (batch_size, n_cats) logits + int labels.
    batch_size, n_cats = 8, 16
    predictions = jax.random.normal(k_pred, (batch_size, n_cats), dtype=jnp.float32)
    targets = jax.random.randint(k_tgt, (batch_size,), 0, n_cats, dtype=jnp.int32)

    loss = focal_loss(predictions, targets)
    jax.block_until_ready(loss)
    ref = _reference_focal_loss(predictions, targets)
    assert jnp.allclose(loss, ref, rtol=1e-5, atol=1e-6), (loss, ref)

    # Second check exercising the batch grid + a partial edge block (B not a
    # multiple of the tile) to validate the tiled/pipelined path.
    k2p, k2t = jax.random.split(jax.random.PRNGKey(1))
    B2, C2 = 40, 24
    preds2 = jax.random.normal(k2p, (B2, C2), dtype=jnp.float32)
    tgts2 = jax.random.randint(k2t, (B2,), 0, C2, dtype=jnp.int32)
    loss2 = focal_loss(preds2, tgts2, block_rows=16)   # grid = (3,), last block partial
    jax.block_until_ready(loss2)
    ref2 = _reference_focal_loss(preds2, tgts2)
    assert jnp.allclose(loss2, ref2, rtol=1e-5, atol=1e-6), (loss2, ref2)

    print("KERNEL_OK")
</pallas_src>

<mosaic_0001>
module attributes {stable_mosaic.version = 11 : i64} {
  func.func @_focal_loss_kernel(%arg0: i32, %arg1: memref<8x16xf32, #tpu.memory_space<vmem>>, %arg2: memref<8x1xi32, #tpu.memory_space<vmem>>, %arg3: memref<8x1xf32, #tpu.memory_space<vmem>>) attributes {dimension_semantics = [#tpu.dimension_semantics<parallel>], iteration_bounds = array<i64: 1>, scalar_prefetch = 0 : i64, scratch_operands = 0 : i64, tpu.core_type = #tpu.core_type<tc>, window_params = [{transform_indices = @transform_0, window_bounds = array<i64: 8, 16>}, {transform_indices = @transform_1, window_bounds = array<i64: 8, 1>}, {transform_indices = @transform_2, window_bounds = array<i64: 8, 1>}]} {
    %c0 = arith.constant 0 : index
    %c0_0 = arith.constant 0 : index
    %0 = vector.load %arg1[%c0, %c0_0] : memref<8x16xf32, #tpu.memory_space<vmem>>, vector<8x16xf32>
    %c0_1 = arith.constant 0 : index
    %c0_2 = arith.constant 0 : index
    %1 = vector.load %arg2[%c0_1, %c0_2] : memref<8x1xi32, #tpu.memory_space<vmem>>, vector<8x1xi32>
    %cst = arith.constant dense<0xFF800000> : vector<8xf32>
    %2 = vector.multi_reduction <maximumf>, %0, %cst [1] : vector<8x16xf32> to vector<8xf32>
    %3 = vector.shape_cast %2 : vector<8xf32> to vector<8x1xf32>
    %4 = vector.broadcast %3 : vector<8x1xf32> to vector<8x16xf32>
    %5 = arith.subf %0, %4 : vector<8x16xf32>
    %6 = math.exp %5 : vector<8x16xf32>
    %cst_3 = arith.constant dense<0.000000e+00> : vector<8xf32>
    %7 = vector.multi_reduction <add>, %6, %cst_3 [1] : vector<8x16xf32> to vector<8xf32>
    %8 = vector.shape_cast %7 : vector<8xf32> to vector<8x1xf32>
    %9 = tpu.iota {dimensions = array<i32: 1>} : vector<8x16xi32>
    %10 = vector.broadcast %1 : vector<8x1xi32> to vector<8x16xi32>
    %11 = arith.cmpi eq, %9, %10 : vector<8x16xi32>
    %cst_4 = arith.constant 0.000000e+00 : f32
    %12 = vector.broadcast %cst_4 : f32 to vector<8x16xf32>
    %13 = arith.select %11, %5, %12 : vector<8x16xi1>, vector<8x16xf32>
    %cst_5 = arith.constant dense<0.000000e+00> : vector<8xf32>
    %14 = vector.multi_reduction <add>, %13, %cst_5 [1] : vector<8x16xf32> to vector<8xf32>
    %15 = vector.shape_cast %14 : vector<8xf32> to vector<8x1xf32>
    %16 = math.log %8 : vector<8x1xf32>
    %17 = arith.subf %16, %15 : vector<8x1xf32>
    %cst_6 = arith.constant 0.000000e+00 : f32
    %18 = vector.broadcast %cst_6 : f32 to vector<8x1xf32>
    %19 = arith.subf %18, %17 : vector<8x1xf32>
    %20 = math.exp %19 : vector<8x1xf32>
    %cst_7 = arith.constant 1.000000e+00 : f32
    %21 = vector.broadcast %cst_7 : f32 to vector<8x1xf32>
    %22 = arith.subf %21, %20 : vector<8x1xf32>
    %cst_8 = arith.constant 0.000000e+00 : f32
    %23 = vector.broadcast %cst_8 : f32 to vector<8x1xf32>
    %24 = arith.maximumf %22, %23 : vector<8x1xf32>
    %25 = arith.mulf %24, %24 : vector<8x1xf32>
    %cst_9 = arith.constant 1.000000e+00 : f32
    %26 = vector.broadcast %cst_9 : f32 to vector<8x1xf32>
    %27 = arith.mulf %26, %25 : vector<8x1xf32>
    %28 = arith.mulf %27, %17 : vector<8x1xf32>
    %c0_10 = arith.constant 0 : index
    %c0_11 = arith.constant 0 : index
    %29 = vector.load %arg3[%c0_10, %c0_11] : memref<8x1xf32, #tpu.memory_space<vmem>>, vector<8x1xf32>
    tpu.vector_store %arg3[%c0_10, %c0_11], %28 {strides = array<i32>} : memref<8x1xf32, #tpu.memory_space<vmem>>, vector<8x1xf32>,
    return
  }
  func.func @transform_0(%arg0: i32) -> (i32, i32) {
    %c0_i32 = arith.constant 0 : i32
    %c0_i32_0 = arith.constant 0 : i32
    return %arg0, %c0_i32 : i32, i32
  }
  func.func @transform_1(%arg0: i32) -> (i32, i32) {
    %c0_i32 = arith.constant 0 : i32
    %c0_i32_0 = arith.constant 0 : i32
    return %arg0, %c0_i32 : i32, i32
  }
  func.func @transform_2(%arg0: i32) -> (i32, i32) {
    %c0_i32 = arith.constant 0 : i32
    %c0_i32_0 = arith.constant 0 : i32
    return %arg0, %c0_i32 : i32, i32
  }
}

</mosaic_0001>

<llo_original>
// kernel: tpu_custom_call.1
$region0: #{tpu_custom_call.1}
  #allocation0 [shape = 'u32[]', space=smem, size = 0x4, offset = 0x4, fixed_abs, tag = 'smem constant byte address 0x4 - core index']
  #allocation1 [shape = 'u32[144,128]{1,0:T(1,128)}', space=vmem, size = 0x12000, scoped, tag = 'internal scratch']
  %s0 = inlined_call_operand.vmem [shape: f32[8,16], index: 0, kind: input, shape index: {}]
  %s1 = inlined_call_operand.vmem [shape: s32[8,1], index: 1, kind: input, shape index: {}]
  %s2 = inlined_call_operand.vmem [shape: f32[8,1], index: 2, kind: output, shape index: {}]
  %s3 = sld [smem:[#allocation0]]
  $region18: #{tpu_custom_call.1} parent=0
    _
  %s5 = ssub.s32 1, %s3
  %s6 = scalar_select 0, %s5, %s3
  // Predicated region
  $region2: #{tpu_custom_call.1} parent=0 // pred_check
    _
  $region3: #{tpu_custom_call.1} parent=0 // pred_check_branch
    %8 = sbr.rel (0) target = $region5
  $region4: #{tpu_custom_call.1} parent=0 // pred_region
    _
  $region5: #{tpu_custom_call.1} parent=0 // pred_fallthru
    _
  // Predicated region
  $region6: #{tpu_custom_call.1} parent=0 // pred_check
    _
  $region7: #{tpu_custom_call.1} parent=0 // pred_check_branch
    %10 = sbr.rel (0) target = $region9
  $region8: #{tpu_custom_call.1} parent=0 // pred_region
    _
  $region9: #{tpu_custom_call.1} parent=0 // pred_fallthru
    _
  %v11 = vld [vmem:[%s0] sm:$0xff]
  %v12 = vld [vmem:[%s1] sm:$0xff]
  %vm13 = vcmask 130048
  %v14 = vsel %vm13, %v11, -inf
  %15 = vmax.xlane.f32.xlu0 %v14
  %v16 = vpop.xlane.xlu0 %15
  %v17 = vsub.f32 %v11, %v16
  %v18 = vmul.f32 %v17, 1.442695
  %v19 = vpow.pop %v18
  %v20 = vsel %vm13, %v19, 0.0
  %21 = vadd.xlane.f32.xlu0 %v20
  %v22 = vpop.xlane.xlu0 %21
  %v23 = vlaneseq
  %v24 = vand.u32 %v23, 127
  %25 = vset.pattern.permute.xlu0 0
  %26 = vperm.xlu0 %25, %v12
  %v27 = vpop.permute.xlu0 %26
  %vm28 = vcmp.eq.s32.totalorder %v24, %v27
  %v29 = vsel %vm28, %v17, 0.0
  %v30 = vsel %vm13, %v29, 0.0
  %31 = vadd.xlane.f32.xlu0 %v30
  %v32 = vpop.xlane.xlu0 %31
  %v33 = vlog2.pop %v22
  %v34 = vmul.f32 %v33, 0.6931472
  %v35 = vsub.f32 %v34, %v32
  %v36 = vsub.f32 0.0, %v35
  %v37 = vmul.f32 %v36, 1.442695
  %v38 = vpow.pop %v37
  %v39 = vsub.f32 1.0, %v38
  %v40 = vmax.f32 %v39, 0.0
  %v41 = vmul.f32 %v40, %v40
  %v42 = vmul.f32 %v41, %v35
  %vm43 = vcmask 7168
  %44 = vst.msk [vmem:[%s2] sm:$0xff] %vm43, %v42
  // Predicated region
  $region10: #{tpu_custom_call.1} parent=0 // pred_check
    _
  $region11: #{tpu_custom_call.1} parent=0 // pred_check_branch
    %46 = sbr.rel (0) target = $region13
  $region12: #{tpu_custom_call.1} parent=0 // pred_region
    _
  $region13: #{tpu_custom_call.1} parent=0 // pred_fallthru
    _
  // Predicated region
  $region14: #{tpu_custom_call.1} parent=0 // pred_check
    _
  $region15: #{tpu_custom_call.1} parent=0 // pred_check_branch
    %48 = sbr.rel (0) target = $region17
  $region16: #{tpu_custom_call.1} parent=0 // pred_region
    _
  $region17: #{tpu_custom_call.1} parent=0 // pred_fallthru
    _

</llo_original>
